<compile_context>
chip_gen: v7x
topology: tpu7x:2x2x1
jax: 0.10.0
libtpu: 0.0.40
codegen_flags: <defaults>
</compile_context>

<pallas_src>
import functools

import jax
import jax.numpy as jnp
from jax.experimental import pallas as pl
from jax.experimental.pallas import tpu as pltpu


def _round_up(x, m):
    return (x + m - 1) // m * m


def _log_sigmoid(x):
    # numerically stable log(sigmoid(x)) = min(x, 0) - log1p(exp(-|x|))
    return jnp.minimum(x, 0.0) - jnp.log1p(jnp.exp(-jnp.abs(x)))


# ---------------------------------------------------------------------------
# Kernel 1: fused projection of the entity pool against [w_ent | w_rel].
# ---------------------------------------------------------------------------
def proj_kernel(x_ref, w_ref, b_ref, o_ref):
    # (TR, Hp) @ (Hp, 2*Kp) on the MXU: bf16 inputs, f32 accumulate, bias in f32.
    o_ref[...] = (
        jnp.dot(x_ref[...], w_ref[...], preferred_element_type=jnp.float32)
        + b_ref[...]
    )


# ---------------------------------------------------------------------------
# Kernel 2: TransE scores + self-adversarial loss partial sums, per batch tile.
# ---------------------------------------------------------------------------
def ke_loss_kernel(hk_ref, rk_ref, tk_ref, nk_ref, out_ref,
                   *, tb, neg_num, kp, bs, margin, adv_temp):
    i = pl.program_id(0)

    hk = hk_ref[...]                                   # (TB, Kp) f32
    rk = rk_ref[...]
    tk = tk_ref[...]
    hr = hk + rk

    # ---- positive score: margin - ||h + r - t||_1 (padded lanes are exact zeros)
    l1_pos = jnp.sum(jnp.abs(hr - tk), axis=-1, keepdims=True)       # (TB, 1)
    pos_term = _log_sigmoid(margin - l1_pos)                         # (TB, 1)

    # validity mask for batch-padding rows (mean later divides by the true bs)
    row_ids = i * tb + jax.lax.broadcasted_iota(jnp.int32, (tb, 1), 0)
    valid = (row_ids < bs).astype(jnp.float32)                       # (TB, 1)
    pos_sum = jnp.sum(pos_term * valid)

    # ---- negative scores ('tail-batch'), lane-dense 2-D layout
    nk = nk_ref[...]                                                 # (TB*neg_num, Kp)
    hr_rep = jnp.broadcast_to(hr[:, None, :], (tb, neg_num, kp)).reshape(
        tb * neg_num, kp)
    l1_neg = jnp.sum(jnp.abs(hr_rep - nk), axis=-1, keepdims=True)   # (TB*neg_num, 1)
    l1_neg = l1_neg.reshape(tb, neg_num)                             # (TB, neg_num)
    neg_score = margin - l1_neg

    # self-adversarial softmax weights (softmax is shift-invariant: margin dropped)
    z = (-l1_neg) * adv_temp
    z = z - jnp.max(z, axis=1, keepdims=True)
    e = jnp.exp(z)
    p = e * pl.reciprocal(jnp.sum(e, axis=1, keepdims=True), approx=True)
    neg_term = jnp.sum(p * _log_sigmoid(-neg_score), axis=1, keepdims=True)  # (TB,1)
    neg_sum = jnp.sum(neg_term * valid)

    # ---- per-tile partial sums: sublanes 0..3 carry pos_sum, 4..7 carry neg_sum
    half = jax.lax.broadcasted_iota(jnp.int32, (8, 128), 0) < 4
    out_ref[0] = jnp.where(half, pos_sum, neg_sum)


# ---------------------------------------------------------------------------
# Wrapper: KE_model.forward (triple loss) given the PLM entity-pool embeddings.
# ---------------------------------------------------------------------------
def ke_model_loss(entity_emb, neg_index, w_ent, b_ent, w_rel, b_rel,
                  ke_margin, adv_temp, neg_num):
    rows, hidden = entity_emb.shape
    bs = rows // 3
    k = w_ent.shape[1]

    kp = _round_up(k, 128)         # lane-dense ke_dim
    hp = _round_up(hidden, 128)    # lane-dense contraction dim

    # ---- projection inputs: zero-padded, fused weight [w_ent | w_rel], bf16 MXU ----
    pool = jnp.pad(entity_emb, ((0, 0), (0, hp - hidden)))
    tr = 256 if rows >= 256 else _round_up(rows, 8)    # pool row tile
    rp = _round_up(rows, tr)
    pool = jnp.pad(pool, ((0, rp - rows), (0, 0))).astype(jnp.bfloat16)

    w_cat = jnp.zeros((hp, 2 * kp), jnp.float32)
    w_cat = w_cat.at[:hidden, :k].set(w_ent).at[:hidden, kp:kp + k].set(w_rel)
    w_cat = w_cat.astype(jnp.bfloat16)
    b_cat = jnp.zeros((1, 2 * kp), jnp.float32)
    b_cat = b_cat.at[:, :k].set(b_ent.reshape(1, -1))
    b_cat = b_cat.at[:, kp:kp + k].set(b_rel.reshape(1, -1))

    proj = pl.pallas_call(
        proj_kernel,
        out_shape=jax.ShapeDtypeStruct((rp, 2 * kp), jnp.float32),
        grid=(rp // tr,),
        in_specs=[pl.BlockSpec((tr, hp), lambda i: (i, 0)),
                  pl.BlockSpec((hp, 2 * kp), lambda i: (0, 0)),   # resident weights
                  pl.BlockSpec((1, 2 * kp), lambda i: (0, 0))],   # resident bias
        out_specs=pl.BlockSpec((tr, 2 * kp), lambda i: (i, 0)),
        compiler_params=pltpu.CompilerParams(dimension_semantics=("parallel",)),
        cost_estimate=pl.CostEstimate(
            flops=2 * rp * hp * 2 * kp,
            transcendentals=0,
            bytes_accessed=rp * hp * 2 + hp * 2 * kp * 2 + rp * 2 * kp * 4),
    )(pool, w_cat, b_cat)

    # ---- slice / gather in ke_dim space (K-wide rows; dedup'ed negative projection) ----
    ek = proj[:rows, :kp]                      # linear_ent(entity pool)
    hk = ek[:bs]
    tk = ek[2 * bs:3 * bs]
    rk = proj[bs:2 * bs, kp:2 * kp]            # linear_rel(relation rows)
    nk = ek[neg_index]                         # (bs*neg_num, Kp)

    # ---- batch tiling for the loss grid (nk double-buffered block budget ~4 MiB) ----
    tb = max(8, min(512, (4 << 20) // max(1, neg_num * kp * 4 * 2)))
    tb = (tb // 8) * 8
    tb = min(tb, _round_up(bs, 8))
    bp = _round_up(bs, tb)
    num_tiles = bp // tb

    hk = jnp.pad(hk, ((0, bp - bs), (0, 0)))
    rk = jnp.pad(rk, ((0, bp - bs), (0, 0)))
    tk = jnp.pad(tk, ((0, bp - bs), (0, 0)))
    nk = jnp.pad(nk, ((0, (bp - bs) * neg_num), (0, 0)))

    kernel = functools.partial(
        ke_loss_kernel, tb=tb, neg_num=neg_num, kp=kp, bs=bs,
        margin=float(ke_margin), adv_temp=float(adv_temp))

    tile_sums = pl.pallas_call(
        kernel,
        out_shape=jax.ShapeDtypeStruct((num_tiles, 8, 128), jnp.float32),
        grid=(num_tiles,),
        in_specs=[pl.BlockSpec((tb, kp), lambda i: (i, 0)),
                  pl.BlockSpec((tb, kp), lambda i: (i, 0)),
                  pl.BlockSpec((tb, kp), lambda i: (i, 0)),
                  pl.BlockSpec((tb * neg_num, kp), lambda i: (i, 0))],
        out_specs=pl.BlockSpec((1, 8, 128), lambda i: (i, 0, 0)),
        compiler_params=pltpu.CompilerParams(dimension_semantics=("parallel",)),
        cost_estimate=pl.CostEstimate(
            flops=bp * kp * (6 + 4 * neg_num),
            transcendentals=bp * (2 + 4 * neg_num),
            bytes_accessed=(3 * bp + bp * neg_num) * kp * 4
                           + num_tiles * 8 * 128 * 4),
    )(hk, rk, tk, nk)

    pos_total = jnp.sum(tile_sums[:, 0, 0])
    neg_total = jnp.sum(tile_sums[:, 4, 0])
    return -(pos_total + neg_total) / (2.0 * bs)


def ke_model_loss_ref(entity_emb, neg_index, w_ent, b_ent, w_rel, b_rel,
                      ke_margin, adv_temp, neg_num):
    """Pure-JAX f32 reference mirroring the PyTorch module."""
    bs = entity_emb.shape[0] // 3
    ke_dim = w_ent.shape[1]
    h, r, t = entity_emb[:bs], entity_emb[bs:2 * bs], entity_emb[2 * bs:3 * bs]
    hk = h @ w_ent + b_ent
    rk = r @ w_rel + b_rel
    tk = t @ w_ent + b_ent
    nk = (entity_emb[neg_index] @ w_ent + b_ent).reshape(bs, neg_num, ke_dim)
    pos_score = ke_margin - jnp.sum(jnp.abs(hk + rk - tk), axis=-1)            # (bs,)
    neg_score = ke_margin - jnp.sum(jnp.abs((hk + rk)[:, None, :] - nk), -1)   # (bs, neg_num)
    p = jax.nn.softmax(neg_score * adv_temp, axis=1)
    neg_term = jnp.sum(p * jax.nn.log_sigmoid(-neg_score), axis=1)
    pos_term = jax.nn.log_sigmoid(pos_score)
    return (-jnp.mean(pos_term) - jnp.mean(neg_term)) * 0.5


if __name__ == "__main__":
    # small shapes consistent with the module
    bs = 8          # batch of triples
    hidden = 32     # args.hidden_size (PLM output dim)
    ke_dim = 16     # args.ke_dim
    neg_num = 4     # args.neg_num
    ke_margin = 9.0     # args.ke_margin
    adv_temp = 1.0      # args.adv_temp

    key = jax.random.PRNGKey(0)
    k_emb, k_we, k_wr, k_be, k_br, k_neg = jax.random.split(key, 6)

    # synthetic output of hw_model.cls_embedding over concat([h, r, t]) -> (3*bs, hidden)
    entity_emb = jax.random.normal(k_emb, (3 * bs, hidden), dtype=jnp.float32)
    # neg_index picks negative tail entities from the concatenated embedding pool
    neg_index = jax.random.randint(k_neg, (bs * neg_num,), 0, 3 * bs)

    # deterministic parameter init (shapes from nn.Linear(hidden_size, ke_dim))
    w_ent = 0.02 * jax.random.normal(k_we, (hidden, ke_dim), dtype=jnp.float32)
    w_rel = 0.02 * jax.random.normal(k_wr, (hidden, ke_dim), dtype=jnp.float32)
    b_ent = 0.02 * jax.random.normal(k_be, (ke_dim,), dtype=jnp.float32)
    b_rel = 0.02 * jax.random.normal(k_br, (ke_dim,), dtype=jnp.float32)

    loss = ke_model_loss(entity_emb, neg_index, w_ent, b_ent, w_rel, b_rel,
                         ke_margin, adv_temp, neg_num)
    loss = jax.block_until_ready(loss)

    loss_ref = ke_model_loss_ref(entity_emb, neg_index, w_ent, b_ent, w_rel, b_rel,
                                 ke_margin, adv_temp, neg_num)
    # bf16 MXU operands + approx softmax reciprocal -> slightly looser tolerance
    assert jnp.allclose(loss, loss_ref, rtol=2e-2, atol=2e-2), (loss, loss_ref)

    print("KERNEL_OK")
</pallas_src>

<mosaic_0001>
module attributes {stable_mosaic.version = 11 : i64} {
  func.func @proj_kernel(%arg0: i32, %arg1: memref<24x128xbf16, #tpu.memory_space<vmem>>, %arg2: memref<128x256xbf16, #tpu.memory_space<vmem>>, %arg3: memref<1x256xf32, #tpu.memory_space<vmem>>, %arg4: memref<24x256xf32, #tpu.memory_space<vmem>>) attributes {dimension_semantics = [#tpu.dimension_semantics<parallel>], iteration_bounds = array<i64: 1>, scalar_prefetch = 0 : i64, scratch_operands = 0 : i64, tpu.core_type = #tpu.core_type<tc>, window_params = [{transform_indices = @transform_0, window_bounds = array<i64: 24, 128>}, {pipeline_mode = #tpu.pipeline_mode<synchronous>, transform_indices = @transform_1, window_bounds = array<i64: 128, 256>}, {pipeline_mode = #tpu.pipeline_mode<synchronous>, transform_indices = @transform_2, window_bounds = array<i64: 1, 256>}, {transform_indices = @transform_3, window_bounds = array<i64: 24, 256>}]} {
    %c0 = arith.constant 0 : index
    %c0_0 = arith.constant 0 : index
    %0 = vector.load %arg1[%c0, %c0_0] : memref<24x128xbf16, #tpu.memory_space<vmem>>, vector<24x128xbf16>
    %c0_1 = arith.constant 0 : index
    %c0_2 = arith.constant 0 : index
    %1 = vector.load %arg2[%c0_1, %c0_2] : memref<128x256xbf16, #tpu.memory_space<vmem>>, vector<128x256xbf16>
    %cst = arith.constant dense<0.000000e+00> : vector<24x256xf32>
    %2 = tpu.matmul %0, %1, %cst {dimension_numbers = #tpu.dot_dimension_numbers<[1], [0], [0], [1], [0, 0, 1, 1], [], []>} : vector<24x128xbf16>, vector<128x256xbf16>, vector<24x256xf32> -> vector<24x256xf32>
    %c0_3 = arith.constant 0 : index
    %c0_4 = arith.constant 0 : index
    %3 = vector.load %arg3[%c0_3, %c0_4] : memref<1x256xf32, #tpu.memory_space<vmem>>, vector<1x256xf32>
    %4 = vector.broadcast %3 : vector<1x256xf32> to vector<24x256xf32>
    %5 = arith.addf %2, %4 : vector<24x256xf32>
    %c0_5 = arith.constant 0 : index
    %c0_6 = arith.constant 0 : index
    %6 = vector.load %arg4[%c0_5, %c0_6] : memref<24x256xf32, #tpu.memory_space<vmem>>, vector<24x256xf32>
    tpu.vector_store %arg4[%c0_5, %c0_6], %5 {strides = array<i32>} : memref<24x256xf32, #tpu.memory_space<vmem>>, vector<24x256xf32>,
    return
  }
  func.func @transform_0(%arg0: i32) -> (i32, i32) {
    %c0_i32 = arith.constant 0 : i32
    %c0_i32_0 = arith.constant 0 : i32
    return %arg0, %c0_i32 : i32, i32
  }
  func.func @transform_1(%arg0: i32) -> (i32, i32) {
    %c0_i32 = arith.constant 0 : i32
    %c0_i32_0 = arith.constant 0 : i32
    %c0_i32_1 = arith.constant 0 : i32
    return %c0_i32, %c0_i32_0 : i32, i32
  }
  func.func @transform_2(%arg0: i32) -> (i32, i32) {
    %c0_i32 = arith.constant 0 : i32
    %c0_i32_0 = arith.constant 0 : i32
    %c0_i32_1 = arith.constant 0 : i32
    return %c0_i32, %c0_i32_0 : i32, i32
  }
  func.func @transform_3(%arg0: i32) -> (i32, i32) {
    %c0_i32 = arith.constant 0 : i32
    %c0_i32_0 = arith.constant 0 : i32
    return %arg0, %c0_i32 : i32, i32
  }
}

</mosaic_0001>

<llo_original>
// kernel: tpu_custom_call.1
$region0: #{tpu_custom_call.1}
  #allocation0 [shape = 'u32[]', space=smem, size = 0x4, offset = 0x4, fixed_abs, tag = 'smem constant byte address 0x4 - core index']
  #allocation1 [shape = 'u32[144,128]{1,0:T(1,128)}', space=vmem, size = 0x12000, scoped, tag = 'internal scratch']
  %s0 = inlined_call_operand.hbm [shape: bf16[24,128], index: 0, kind: input, shape index: {}]
  %s1 = inlined_call_operand.hbm [shape: bf16[128,256], index: 1, kind: input, shape index: {}]
  %s2 = inlined_call_operand.vmem [shape: f32[1,256], index: 2, kind: input, shape index: {}]
  %s3 = inlined_call_operand.hbm [shape: f32[24,256], index: 3, kind: output, shape index: {}]
  %s4 = sld [smem:[#allocation0]]
  $region30: #{tpu_custom_call.1} parent=0
    _
  %s6 = ssub.s32 1, %s4
  %s7 = scalar_select 0, %s6, %s4
  $region1: #{tpu_custom_call.1} parent=0
    #allocation2 [shape = 'u8[6144]{0}', space=vmem, size = 0x1800, scoped, tag = 'input window, operand 0, single buffered']
    #allocation3 [shape = 's32[1]{0}', space=sflag, size = 0x4, scoped, tag = 'scoped memory for tpu_custom_call.1']
    #allocation4 [shape = 's32[1]{0}', space=sflag, size = 0x4, scoped, tag = 'scoped memory for tpu_custom_call.1']
    #allocation5 [shape = 'u8[65536]{0}', space=vmem, size = 0x10000, scoped, tag = 'input window, operand 1, single buffered']
    #allocation6 [shape = 's32[1]{0}', space=sflag, size = 0x4, scoped, tag = 'scoped memory for tpu_custom_call.1']
    #allocation7 [shape = 'u8[24576]{0}', space=vmem, size = 0x6000, scoped, tag = 'output window, operand 0, single buffered']
    %8 = vsyncpa [#allocation3], 0
    %9 = vsyncpa [#allocation6], 0
    %10 = vsyncpa [#allocation4], 0
    // Predicated region
    $region2: #{tpu_custom_call.1} parent=1 // pred_check
      _
    $region3: #{tpu_custom_call.1} parent=1 // pred_check_branch
      %12 = sbr.rel (0) target = $region5
    $region4: #{tpu_custom_call.1} parent=1 // pred_region
      %s14 = ssub.s32 192, 192
      %15 = vsyncadd [#allocation3], %s14
      %s16 = sshll.u32 [#allocation2], 4
      %s17 = int_to_ptr.vmem [resolvable:$true] %s16
      %22 = dma.hbm_to_vmem [thread:$0]  %s0, 192, %s17, [#allocation3], 64, 64, 4
    $region5: #{tpu_custom_call.1} parent=1 // pred_fallthru
      _
    // Predicated region
    $region6: #{tpu_custom_call.1} parent=1 // pred_check
      _
    $region7: #{tpu_custom_call.1} parent=1 // pred_check_branch
      %24 = sbr.rel (0) target = $region9
    $region8: #{tpu_custom_call.1} parent=1 // pred_region
      %s26 = ssub.s32 2048, 2048
      %27 = vsyncadd [#allocation6], %s26
      %s28 = sshll.u32 [#allocation5], 4
      %s29 = int_to_ptr.vmem [resolvable:$true] %s28
      %34 = dma.hbm_to_vmem [thread:$0]  %s1, 2048, %s29, [#allocation6], 128, 128, 8
    $region9: #{tpu_custom_call.1} parent=1 // pred_fallthru
      _
    // Predicated region
    $region10: #{tpu_custom_call.1} parent=1 // pred_check
      _
    $region11: #{tpu_custom_call.1} parent=1 // pred_check_branch
      %36 = sbr.rel (0) target = $region13
    $region12: #{tpu_custom_call.1} parent=1 // pred_region
      _
    $region13: #{tpu_custom_call.1} parent=1 // pred_fallthru
      _
    // Predicated region
    $region14: #{tpu_custom_call.1} parent=1 // pred_check
      _
    $region15: #{tpu_custom_call.1} parent=1 // pred_check_branch
      %38 = sbr.rel (0) target = $region17
    $region16: #{tpu_custom_call.1} parent=1 // pred_region
      %39 = dma.done [#allocation3], 192
    $region17: #{tpu_custom_call.1} parent=1 // pred_fallthru
      _
    // Predicated region
    $region18: #{tpu_custom_call.1} parent=1 // pred_check
      _
    $region19: #{tpu_custom_call.1} parent=1 // pred_check_branch
      %41 = sbr.rel (0) target = $region21
    $region20: #{tpu_custom_call.1} parent=1 // pred_region
      %42 = dma.done [#allocation6], 2048
    $region21: #{tpu_custom_call.1} parent=1 // pred_fallthru
      _
    %v44 = vld [vmem:[#allocation2] sm:$0xf]
    %v45 = vld [vmem:[#allocation2 + $0x4] sm:$0xf]
    %v46 = vld [vmem:[#allocation2 + $0x8] sm:$0xf]
    %v47 = vld [vmem:[#allocation5] sm:$0xff]
    %v48 = vld [vmem:[#allocation5 + $0x8] sm:$0xff]
    %v49 = vld [vmem:[#allocation5 + $0x10] sm:$0xff]
    %v50 = vld [vmem:[#allocation5 + $0x18] sm:$0xff]
    %v51 = vld [vmem:[#allocation5 + $0x20] sm:$0xff]
    %v52 = vld [vmem:[#allocation5 + $0x28] sm:$0xff]
    %v53 = vld [vmem:[#allocation5 + $0x30] sm:$0xff]
    %v54 = vld [vmem:[#allocation5 + $0x38] sm:$0xff]
    %v55 = vld [vmem:[#allocation5 + $0x40] sm:$0xff]
    %v56 = vld [vmem:[#allocation5 + $0x48] sm:$0xff]
    %v57 = vld [vmem:[#allocation5 + $0x50] sm:$0xff]
    %v58 = vld [vmem:[#allocation5 + $0x58] sm:$0xff]
    %v59 = vld [vmem:[#allocation5 + $0x60] sm:$0xff]
    %v60 = vld [vmem:[#allocation5 + $0x68] sm:$0xff]
    %v61 = vld [vmem:[#allocation5 + $0x70] sm:$0xff]
    %v62 = vld [vmem:[#allocation5 + $0x78] sm:$0xff]
    %v63 = vld [vmem:[%s2] sm:$0x3]
    %v65 = vlaneseq
    %v66 = vshrl.u32 %v65, 7
    %v67 = vsub.s32 0, %v66
    %v68 = vrot.slane %v63, %v67
    %v69 = vlaneseq
    %v70 = vshrl.u32 %v69, 7
    %v71 = vsub.s32 1, %v70
    %v72 = vrot.slane %v63, %v71
    %v78 = vunpack.c.l.b16 %v44
    %v79 = vunpack.c.l.b16 %v45
    %v80 = vunpack.c.l.b16 %v46
    %v81 = vpack.c.b16 %v79, %v78
    %v82 = vpack.c.b16 %v80, %v80
    %v101 = vunpack.c.l.b16 %v47
    %v102 = vunpack.c.h.b16 %v47
    %v103 = vunpack.c.l.b16 %v48
    %v104 = vunpack.c.h.b16 %v48
    %v105 = vunpack.c.l.b16 %v49
    %v106 = vunpack.c.h.b16 %v49
    %v107 = vunpack.c.l.b16 %v50
    %v108 = vunpack.c.h.b16 %v50
    %v109 = vunpack.c.l.b16 %v51
    %v110 = vunpack.c.h.b16 %v51
    %v111 = vunpack.c.l.b16 %v52
    %v112 = vunpack.c.h.b16 %v52
    %v113 = vunpack.c.l.b16 %v53
    %v114 = vunpack.c.h.b16 %v53
    %v115 = vunpack.c.l.b16 %v54
    %v116 = vunpack.c.h.b16 %v54
    %v117 = vunpack.c.l.b16 %v55
    %v118 = vunpack.c.h.b16 %v55
    %v119 = vunpack.c.l.b16 %v56
    %v120 = vunpack.c.h.b16 %v56
    %v121 = vunpack.c.l.b16 %v57
    %v122 = vunpack.c.h.b16 %v57
    %v123 = vunpack.c.l.b16 %v58
    %v124 = vunpack.c.h.b16 %v58
    %v125 = vunpack.c.l.b16 %v59
    %v126 = vunpack.c.h.b16 %v59
    %v127 = vunpack.c.l.b16 %v60
    %v128 = vunpack.c.h.b16 %v60
    %v129 = vunpack.c.l.b16 %v61
    %v130 = vunpack.c.h.b16 %v61
    %v131 = vunpack.c.l.b16 %v62
    %v132 = vunpack.c.h.b16 %v62
    %v133 = vpack.c.b16 %v103, %v101
    %v134 = vpack.c.b16 %v104, %v102
    %v135 = vpack.c.b16 %v107, %v105
    %v136 = vpack.c.b16 %v108, %v106
    %v137 = vpack.c.b16 %v111, %v109
    %v138 = vpack.c.b16 %v112, %v110
    %v139 = vpack.c.b16 %v115, %v113
    %v140 = vpack.c.b16 %v116, %v114
    %v141 = vpack.c.b16 %v119, %v117
    %v142 = vpack.c.b16 %v120, %v118
    %v143 = vpack.c.b16 %v123, %v121
    %v144 = vpack.c.b16 %v124, %v122
    %v145 = vpack.c.b16 %v127, %v125
    %v146 = vpack.c.b16 %v128, %v126
    %v147 = vpack.c.b16 %v131, %v129
    %v148 = vpack.c.b16 %v132, %v130
    %165 = vmatprep.subr.bf16.mxu0 %v134
    %166 = vmatpush1.bf16.msra.mxu0 %v133
    %167 = vmatprep.subr.bf16.mxu0 %v136
    %168 = vmatpush1.bf16.msra.mxu0 %v135
    %169 = vmatprep.subr.bf16.mxu0 %v138
    %170 = vmatpush1.bf16.msra.mxu0 %v137
    %171 = vmatprep.subr.bf16.mxu0 %v140
    %172 = vmatpush1.bf16.msra.mxu0 %v139
    %173 = vmatprep.subr.bf16.mxu0 %v142
    %174 = vmatpush1.bf16.msra.mxu0 %v141
    %175 = vmatprep.subr.bf16.mxu0 %v144
    %176 = vmatpush1.bf16.msra.mxu0 %v143
    %177 = vmatprep.subr.bf16.mxu0 %v146
    %178 = vmatpush1.bf16.msra.mxu0 %v145
    %179 = vmatprep.subr.bf16.mxu0 %v148
    %180 = vmatpush1.bf16.msra.mxu0 %v147
    %181 = vmatprep.subr.bf16.mxu0 0
    %182 = vmatpush1.bf16.msra.mxu0 0
    %183 = vmatprep.subr.bf16.mxu0 0
    %184 = vmatpush1.bf16.msra.mxu0 0
    %185 = vmatprep.subr.bf16.mxu0 0
    %186 = vmatpush1.bf16.msra.mxu0 0
    %187 = vmatprep.subr.bf16.mxu0 0
    %188 = vmatpush1.bf16.msra.mxu0 0
    %189 = vmatprep.subr.bf16.mxu0 0
    %190 = vmatpush1.bf16.msra.mxu0 0
    %191 = vmatprep.subr.bf16.mxu0 0
    %192 = vmatpush1.bf16.msra.mxu0 0
    %193 = vmatprep.subr.bf16.mxu0 0
    %194 = vmatpush1.bf16.msra.mxu0 0
    %195 = vmatprep.subr.bf16.mxu0 0
    %196 = vmatpush1.bf16.msra.mxu0 0
    %197 = vmatprep.mubr.bf16.mxu0 0
    %198 = vmatmul.mubr.bf16.gmra.mrb[0].mxu0 %v81
    %v199 = vpop.f32.mrb[0].mxu0
    %v200 = vadd.f32 %v68, %v199
    %v201 = vpop.f32.mrb[0].mxu0
    %v202 = vadd.f32 %v72, %v201
    %v203 = vpop.f32.mrb[0].mxu0
    %v204 = vadd.f32 %v68, %v203
    %v205 = vpop.f32.mrb[0].mxu0
    %v206 = vadd.f32 %v72, %v205
    %207 = vmatprep.mubr.bf16.mxu0 0
    %208 = vmatmul.mubr.bf16.gmra.mrb[0].mxu0 %v82
    %v209 = vpop.f32.mrb[0].mxu0
    %v210 = vadd.f32 %v68, %v209
    %v211 = vpop.f32.mrb[0].mxu0
    %v212 = vadd.f32 %v72, %v211
    %v213 = vpop.f32.mrb[0].mxu0
    %v214 = vpop.f32.mrb[0].mxu0
    %215 = vdwg.mxu0
    %216 = vst [vmem:[#allocation7] sm:$0xff] %v200
    %217 = vst [vmem:[#allocation7 + $0x8] sm:$0xff] %v202
    %218 = vst [vmem:[#allocation7 + $0x10] sm:$0xff] %v204
    %219 = vst [vmem:[#allocation7 + $0x18] sm:$0xff] %v206
    %220 = vst [vmem:[#allocation7 + $0x20] sm:$0xff] %v210
    %221 = vst [vmem:[#allocation7 + $0x28] sm:$0xff] %v212
    // Predicated region
    $region22: #{tpu_custom_call.1} parent=1 // pred_check
      _
    $region23: #{tpu_custom_call.1} parent=1 // pred_check_branch
      %223 = sbr.rel (0) target = $region25
    $region24: #{tpu_custom_call.1} parent=1 // pred_region
      %s225 = ssub.s32 768, 768
      %226 = vsyncadd [#allocation4], %s225
      %s227 = sshll.u32 [#allocation7], 4
      %s228 = int_to_ptr.vmem [resolvable:$true] %s227
      %233 = dma.vmem_to_hbm [thread:$0]  %s228, 768, %s3, [#allocation4], 256, 256, 16
    $region25: #{tpu_custom_call.1} parent=1 // pred_fallthru
      _
    // Predicated region
    $region26: #{tpu_custom_call.1} parent=1 // pred_check
      _
    $region27: #{tpu_custom_call.1} parent=1 // pred_check_branch
      %235 = sbr.rel (0) target = $region29
    $region28: #{tpu_custom_call.1} parent=1 // pred_region
      %236 = dma.done [#allocation4], 768
    $region29: #{tpu_custom_call.1} parent=1 // pred_fallthru
      _
    %237 = vsyncpa [#allocation3], 1
    %238 = vsyncpa [#allocation6], 1
    %239 = vsyncpa [#allocation4], 1

</llo_original>
